<compile_context>
chip_gen: v6e
topology: v6e:2x2x1
jax: 0.10.0
libtpu: 0.0.40
codegen_flags: <defaults>
</compile_context>

<pallas_src>
import math

import jax
import jax.numpy as jnp
from jax import lax
from jax.experimental import pallas as pl
from jax.experimental.pallas import tpu as pltpu


def _attn_kernel(scale_ref, q_ref, k_ref, v_ref, o_ref):
    # q_ref: (Lq, D), k_ref: (Lk, D), v_ref: (Lk, D), o_ref: (Lq, D)
    scale = scale_ref[0]                       # f32 scalar from SMEM
    q = q_ref[...]
    k = k_ref[...]
    v = v_ref[...]

    # Fold the scale into q (Lq*D elements) instead of the (Lq, Lk) scores.
    # (q * s) @ k^T == s * (q @ k^T); cast back so the MXU sees native dtype.
    q_scaled = (q.astype(jnp.float32) * scale).astype(q_ref.dtype)

    # QK^T without materializing a transpose of K: contract last dim of both.
    qk = lax.dot_general(
        q_scaled,
        k,
        dimension_numbers=(((1,), (1,)), ((), ())),
        preferred_element_type=jnp.float32,
    )  # (Lq, Lk), f32 accumulation

    # Numerically-stable softmax over the key axis (f32 on VPU/EUP).
    m = jnp.max(qk, axis=-1, keepdims=True)
    e = jnp.exp(qk - m)
    denom = jnp.sum(e, axis=-1, keepdims=True)
    p = e * pl.reciprocal(denom, approx=True)

    # Dropout (eval mode) == identity.

    # output = p @ v, MXU with f32 accumulation; feed p in v's native dtype.
    out = jnp.dot(p.astype(v_ref.dtype), v, preferred_element_type=jnp.float32)
    o_ref[...] = out.astype(o_ref.dtype)


def attention_pallas(query, key, value, scale_factor):
    """query: (B,H,Lq,D), key/value: (B,H,Lk,D), scale_factor: (1,) f32."""
    B, H, Lq, D = query.shape
    Lk = key.shape[2]
    BH = B * H

    # Flatten (B, H) -> one grid axis; each program handles one head.
    q = query.reshape(BH, Lq, D)
    k = key.reshape(BH, Lk, D)
    v = value.reshape(BH, Lk, D)

    q_spec = pl.BlockSpec((None, Lq, D), lambda i: (i, 0, 0))
    k_spec = pl.BlockSpec((None, Lk, D), lambda i: (i, 0, 0))
    v_spec = pl.BlockSpec((None, Lk, D), lambda i: (i, 0, 0))
    o_spec = pl.BlockSpec((None, Lq, D), lambda i: (i, 0, 0))
    scale_spec = pl.BlockSpec(memory_space=pltpu.MemorySpace.SMEM)

    out = pl.pallas_call(
        _attn_kernel,
        out_shape=jax.ShapeDtypeStruct((BH, Lq, D), query.dtype),
        grid=(BH,),
        in_specs=[scale_spec, q_spec, k_spec, v_spec],
        out_specs=o_spec,
        compiler_params=pltpu.CompilerParams(
            dimension_semantics=("parallel",)
        ),
    )(scale_factor, q, k, v)

    return out.reshape(B, H, Lq, D)


def reference(query, key, value, scale_factor):
    qk = jnp.einsum("bhqd,bhkd->bhqk", query, key)
    scaled_qk = qk * scale_factor[0]
    p = jax.nn.softmax(scaled_qk, axis=-1)
    return jnp.einsum("bhqk,bhkd->bhqd", p, value)


if __name__ == "__main__":
    # Shapes from the PyTorch spec: q (1,2,3,512), k/v (1,2,5,512),
    # scale_factor = sqrt(512) (the module MULTIPLIES scores by it).
    embed_dim = 512
    B, H, Lq, Lk = 1, 2, 3, 5

    key0 = jax.random.PRNGKey(0)
    kq, kk, kv = jax.random.split(key0, 3)
    query = jax.random.normal(kq, (B, H, Lq, embed_dim), dtype=jnp.float32)
    key_t = jax.random.normal(kk, (B, H, Lk, embed_dim), dtype=jnp.float32)
    value = jax.random.normal(kv, (B, H, Lk, embed_dim), dtype=jnp.float32)
    scale_factor = jnp.array([math.sqrt(float(embed_dim))], dtype=jnp.float32)

    out = attention_pallas(query, key_t, value, scale_factor)
    out = jax.block_until_ready(out)

    ref = reference(query, key_t, value, scale_factor)
    assert out.shape == (B, H, Lq, embed_dim)
    # approx reciprocal on the EUP introduces ~1e-4-level relative error
    assert jnp.allclose(out, ref, atol=1e-3, rtol=1e-3), (
        f"max abs err = {jnp.max(jnp.abs(out - ref))}"
    )

    print("KERNEL_OK")
</pallas_src>

<mosaic_0001>
module attributes {stable_mosaic.version = 11 : i64} {
  func.func @_attn_kernel(%arg0: i32, %arg1: memref<1xf32, #tpu.memory_space<smem>>, %arg2: memref<1x3x512xf32, #tpu.memory_space<vmem>>, %arg3: memref<1x5x512xf32, #tpu.memory_space<vmem>>, %arg4: memref<1x5x512xf32, #tpu.memory_space<vmem>>, %arg5: memref<1x3x512xf32, #tpu.memory_space<vmem>>) attributes {dimension_semantics = [#tpu.dimension_semantics<parallel>], iteration_bounds = array<i64: 2>, scalar_prefetch = 0 : i64, scratch_operands = 0 : i64, tpu.core_type = #tpu.core_type<tc>, window_params = [{transform_indices = @transform_0, window_bounds = array<i64: 1>}, {transform_indices = @transform_1, window_bounds = array<i64: 1, 3, 512>}, {transform_indices = @transform_2, window_bounds = array<i64: 1, 5, 512>}, {transform_indices = @transform_3, window_bounds = array<i64: 1, 5, 512>}, {transform_indices = @transform_4, window_bounds = array<i64: 1, 3, 512>}]} {
    %c0 = arith.constant 0 : index
    %0 = memref.load %arg1[%c0] : memref<1xf32, #tpu.memory_space<smem>>
    %c0_0 = arith.constant 0 : index
    %c0_1 = arith.constant 0 : index
    %c0_2 = arith.constant 0 : index
    %1 = vector.load %arg2[%c0_0, %c0_1, %c0_2] : memref<1x3x512xf32, #tpu.memory_space<vmem>>, vector<1x3x512xf32>
    %2 = vector.shape_cast %1 : vector<1x3x512xf32> to vector<3x512xf32>
    %c0_3 = arith.constant 0 : index
    %c0_4 = arith.constant 0 : index
    %c0_5 = arith.constant 0 : index
    %3 = vector.load %arg3[%c0_3, %c0_4, %c0_5] : memref<1x5x512xf32, #tpu.memory_space<vmem>>, vector<1x5x512xf32>
    %4 = vector.shape_cast %3 : vector<1x5x512xf32> to vector<5x512xf32>
    %c0_6 = arith.constant 0 : index
    %c0_7 = arith.constant 0 : index
    %c0_8 = arith.constant 0 : index
    %5 = vector.load %arg4[%c0_6, %c0_7, %c0_8] : memref<1x5x512xf32, #tpu.memory_space<vmem>>, vector<1x5x512xf32>
    %6 = vector.shape_cast %5 : vector<1x5x512xf32> to vector<5x512xf32>
    %7 = vector.broadcast %0 : f32 to vector<3x512xf32>
    %8 = arith.mulf %2, %7 : vector<3x512xf32>
    %cst = arith.constant dense<0.000000e+00> : vector<3x5xf32>
    %9 = tpu.matmul %8, %4, %cst {dimension_numbers = #tpu.dot_dimension_numbers<[1], [1], [0], [0], [0, 0, 1, 0], [], []>} : vector<3x512xf32>, vector<5x512xf32>, vector<3x5xf32> -> vector<3x5xf32>
    %cst_9 = arith.constant dense<0xFF800000> : vector<3xf32>
    %10 = vector.multi_reduction <maximumf>, %9, %cst_9 [1] : vector<3x5xf32> to vector<3xf32>
    %11 = vector.shape_cast %10 : vector<3xf32> to vector<3x1xf32>
    %12 = vector.broadcast %11 : vector<3x1xf32> to vector<3x5xf32>
    %13 = arith.subf %9, %12 : vector<3x5xf32>
    %14 = math.exp %13 : vector<3x5xf32>
    %cst_10 = arith.constant dense<0.000000e+00> : vector<3xf32>
    %15 = vector.multi_reduction <add>, %14, %cst_10 [1] : vector<3x5xf32> to vector<3xf32>
    %16 = vector.shape_cast %15 : vector<3xf32> to vector<3x1xf32>
    %17 = tpu.reciprocal %16 {approx = true} : vector<3x1xf32> -> vector<3x1xf32>
    %18 = vector.broadcast %17 : vector<3x1xf32> to vector<3x5xf32>
    %19 = arith.mulf %14, %18 : vector<3x5xf32>
    %cst_11 = arith.constant dense<0.000000e+00> : vector<3x512xf32>
    %20 = tpu.matmul %19, %6, %cst_11 {dimension_numbers = #tpu.dot_dimension_numbers<[1], [0], [0], [1], [0, 0, 1, 1], [], []>} : vector<3x5xf32>, vector<5x512xf32>, vector<3x512xf32> -> vector<3x512xf32>
    %c0_12 = arith.constant 0 : index
    %c0_13 = arith.constant 0 : index
    %c0_14 = arith.constant 0 : index
    %21 = vector.load %arg5[%c0_12, %c0_13, %c0_14] : memref<1x3x512xf32, #tpu.memory_space<vmem>>, vector<1x3x512xf32>
    %22 = vector.shape_cast %21 : vector<1x3x512xf32> to vector<3x512xf32>
    %23 = vector.shape_cast %20 : vector<3x512xf32> to vector<1x3x512xf32>
    tpu.vector_store %arg5[%c0_12, %c0_13, %c0_14], %23 {strides = array<i32>} : memref<1x3x512xf32, #tpu.memory_space<vmem>>, vector<1x3x512xf32>,
    return
  }
  func.func @transform_0(%arg0: i32) -> i32 {
    %c0_i32 = arith.constant 0 : i32
    %c0_i32_0 = arith.constant 0 : i32
    return %c0_i32 : i32
  }
  func.func @transform_1(%arg0: i32) -> (i32, i32, i32) {
    %c0_i32 = arith.constant 0 : i32
    %c0_i32_0 = arith.constant 0 : i32
    %c0_i32_1 = arith.constant 0 : i32
    return %arg0, %c0_i32, %c0_i32_0 : i32, i32, i32
  }
  func.func @transform_2(%arg0: i32) -> (i32, i32, i32) {
    %c0_i32 = arith.constant 0 : i32
    %c0_i32_0 = arith.constant 0 : i32
    %c0_i32_1 = arith.constant 0 : i32
    return %arg0, %c0_i32, %c0_i32_0 : i32, i32, i32
  }
  func.func @transform_3(%arg0: i32) -> (i32, i32, i32) {
    %c0_i32 = arith.constant 0 : i32
    %c0_i32_0 = arith.constant 0 : i32
    %c0_i32_1 = arith.constant 0 : i32
    return %arg0, %c0_i32, %c0_i32_0 : i32, i32, i32
  }
  func.func @transform_4(%arg0: i32) -> (i32, i32, i32) {
    %c0_i32 = arith.constant 0 : i32
    %c0_i32_0 = arith.constant 0 : i32
    %c0_i32_1 = arith.constant 0 : i32
    return %arg0, %c0_i32, %c0_i32_0 : i32, i32, i32
  }
}

</mosaic_0001>

<llo_original>
// kernel: tpu_custom_call.1
$region0: #{tpu_custom_call.1}
  #allocation0 [shape = 'u32[]', space=smem, size = 0x4, offset = 0x4, fixed_abs, tag = 'smem constant byte address 0x4 - core index']
  #allocation1 [shape = 'u32[144,128]{1,0:T(1,128)}', space=vmem, size = 0x12000, scoped, tag = 'internal scratch']
  #allocation2 [shape = 'f32[1]{0:T(128)S(6)}', space=smem, size = 0x200, scoped, tag = 'scoped memory for tpu_custom_call.1']
  %s0 = inlined_call_operand.<no memory space> [shape: f32[1], index: 0, kind: input, shape index: {}]
  %s1 = inlined_call_operand.vmem [shape: f32[2,3,512], index: 1, kind: input, shape index: {}]
  %s2 = inlined_call_operand.vmem [shape: f32[2,5,512], index: 2, kind: input, shape index: {}]
  %s3 = inlined_call_operand.vmem [shape: f32[2,5,512], index: 3, kind: input, shape index: {}]
  %s4 = inlined_call_operand.vmem [shape: f32[2,3,512], index: 4, kind: output, shape index: {}]
  %s5 = sld [smem:[#allocation0]]
  $region49: #{tpu_custom_call.1} parent=0
    _
  %s7 = ssub.s32 1, %s5
  %s8 = scalar_select 0, %s7, %s5
  %9 = sst [smem:[#allocation2]] %s0
  loop: start=0, step=1, limit=4
  $region2: #{tpu_custom_call.1} parent=0 // loop_pre_header
    _
  $region3: #{tpu_custom_call.1} parent=0 // loop_header
    %s11 = sphi 0, %s15
    %p12 = scmp.ge.s32.totalorder %s11, 4
    %s19 = sphi 0, %s19
    %s21 = sphi 0, %s19
    %s22 = sphi 0, %s21
    %s36 = sphi 0, %s22
    %s42 = sphi 0, %s44
    %s45 = sphi 0, %s42
    %s46 = sphi 0, %s45
    %s62 = sphi 0, %s46
    %s68 = sphi 0, %s70
    %s71 = sphi 0, %s68
    %s72 = sphi 0, %s71
    %s88 = sphi 0, %s72
    %s94 = sphi 0, %s96
    %s97 = sphi 0, %s94
    %s98 = sphi 0, %s97
    %s114 = sphi 0, %s98
    %s120 = sphi 0, %s122
    %s123 = sphi 0, %s120
    %s124 = sphi 0, %s123
    %s140 = sphi 0, %s124
  $region4: #{tpu_custom_call.1} parent=0 // loop_header_branch
    %14 = sbr.rel (%p12) target = $region8
  $region5: #{tpu_custom_call.1} parent=0 // loop_body
    %s16 = ssub.s32 %s11, 1
    %s17 = ssub.s32 %s11, 2
    %s18 = sadd.s32 %s11, 1
    %s20 = sadd.s32 %s19, 1
    %p23 = scmp.eq.s32.totalorder %s11, 1
    %p24 = scmp.ne.s32.totalorder %s19, %s21
    %p25 = scmp.eq.s32.totalorder %s11, 0
    %p26 = por %p24, %p25
    %p27 = scmp.ne.s32.totalorder %s19, %s21
    %p28 = scmp.eq.s32.totalorder %s16, 1
    %p29 = por %p27, %p28
    %p30 = scmp.ne.s32.totalorder %s21, %s22
    %p31 = scmp.eq.s32.totalorder %s16, 0
    %p32 = por %p30, %p31
    %p33 = scmp.ne.s32.totalorder %s21, %s22
    %p34 = scmp.eq.s32.totalorder %s17, 1
    %p35 = por %p33, %p34
    %p37 = scmp.ne.s32.totalorder %s22, %s36
    %p38 = scmp.eq.s32.totalorder %s17, 0
    %p39 = por %p37, %p38
    %s40 = ssub.s32 %s11, %s18
    %p41 = scmp.eq.s32.totalorder %s40, 0
    %s43 = sadd.s32 %s42, 1
    %s44 = scalar_select %p41, %s42, %s43
    %p47 = pneg %p41
    %p48 = scmp.eq.s32.totalorder %s11, 1
    %p49 = por %p47, %p48
    %p50 = scmp.ne.s32.totalorder %s42, %s45
    %p51 = scmp.eq.s32.totalorder %s11, 0
    %p52 = por %p50, %p51
    %p53 = scmp.ne.s32.totalorder %s42, %s45
    %p54 = scmp.eq.s32.totalorder %s16, 1
    %p55 = por %p53, %p54
    %p56 = scmp.ne.s32.totalorder %s45, %s46
    %p57 = scmp.eq.s32.totalorder %s16, 0
    %p58 = por %p56, %p57
    %p59 = scmp.ne.s32.totalorder %s45, %s46
    %p60 = scmp.eq.s32.totalorder %s17, 1
    %p61 = por %p59, %p60
    %p63 = scmp.ne.s32.totalorder %s46, %s62
    %p64 = scmp.eq.s32.totalorder %s17, 0
    %p65 = por %p63, %p64
    %s66 = ssub.s32 %s11, %s18
    %p67 = scmp.eq.s32.totalorder %s66, 0
    %s69 = sadd.s32 %s68, 1
    %s70 = scalar_select %p67, %s68, %s69
    %p73 = pneg %p67
    %p74 = scmp.eq.s32.totalorder %s11, 1
    %p75 = por %p73, %p74
    %p76 = scmp.ne.s32.totalorder %s68, %s71
    %p77 = scmp.eq.s32.totalorder %s11, 0
    %p78 = por %p76, %p77
    %p79 = scmp.ne.s32.totalorder %s68, %s71
    %p80 = scmp.eq.s32.totalorder %s16, 1
    %p81 = por %p79, %p80
    %p82 = scmp.ne.s32.totalorder %s71, %s72
    %p83 = scmp.eq.s32.totalorder %s16, 0
    %p84 = por %p82, %p83
    %p85 = scmp.ne.s32.totalorder %s71, %s72
    %p86 = scmp.eq.s32.totalorder %s17, 1
    %p87 = por %p85, %p86
    %p89 = scmp.ne.s32.totalorder %s72, %s88
    %p90 = scmp.eq.s32.totalorder %s17, 0
    %p91 = por %p89, %p90
    %s92 = ssub.s32 %s11, %s18
    %p93 = scmp.eq.s32.totalorder %s92, 0
    %s95 = sadd.s32 %s94, 1
    %s96 = scalar_select %p93, %s94, %s95
    %p99 = pneg %p93
    %p100 = scmp.eq.s32.totalorder %s11, 1
    %p101 = por %p99, %p100
    %p102 = scmp.ne.s32.totalorder %s94, %s97
    %p103 = scmp.eq.s32.totalorder %s11, 0
    %p104 = por %p102, %p103
    %p105 = scmp.ne.s32.totalorder %s94, %s97
    %p106 = scmp.eq.s32.totalorder %s16, 1
    %p107 = por %p105, %p106
    %p108 = scmp.ne.s32.totalorder %s97, %s98
    %p109 = scmp.eq.s32.totalorder %s16, 0
    %p110 = por %p108, %p109
    %p111 = scmp.ne.s32.totalorder %s97, %s98
    %p112 = scmp.eq.s32.totalorder %s17, 1
    %p113 = por %p111, %p112
    %p115 = scmp.ne.s32.totalorder %s98, %s114
    %p116 = scmp.eq.s32.totalorder %s17, 0
    %p117 = por %p115, %p116
    %s118 = ssub.s32 %s11, %s18
    %p119 = scmp.eq.s32.totalorder %s118, 0
    %s121 = sadd.s32 %s120, 1
    %s122 = scalar_select %p119, %s120, %s121
    %p125 = pneg %p119
    %p126 = scmp.eq.s32.totalorder %s11, 1
    %p127 = por %p125, %p126
    %p128 = scmp.ne.s32.totalorder %s120, %s123
    %p129 = scmp.eq.s32.totalorder %s11, 0
    %p130 = por %p128, %p129
    %p131 = scmp.ne.s32.totalorder %s120, %s123
    %p132 = scmp.eq.s32.totalorder %s16, 1
    %p133 = por %p131, %p132
    %p134 = scmp.ne.s32.totalorder %s123, %s124
    %p135 = scmp.eq.s32.totalorder %s16, 0
    %p136 = por %p134, %p135
    %p137 = scmp.ne.s32.totalorder %s123, %s124
    %p138 = scmp.eq.s32.totalorder %s17, 1
    %p139 = por %p137, %p138
    %p141 = scmp.ne.s32.totalorder %s124, %s140
    %p142 = scmp.eq.s32.totalorder %s17, 0
    %p143 = por %p141, %p142
    %p144 = scmp.le.s32.totalorder 1, %s11
    %p145 = scmp.lt.s32.totalorder %s11, 3
    %p146 = pnand %p144, %p145
    %p147 = pneg %p146
    // Predicated region
    $region9: #{tpu_custom_call.1} parent=5 // pred_check
      _
    $region10: #{tpu_custom_call.1} parent=5 // pred_check_branch
      %149 = sbr.rel (%p146) target = $region12
    $region11: #{tpu_custom_call.1} parent=5 // pred_region
      %s150 = ssub.s32 %s11, 1
      // Predicated region
      $region13: #{tpu_custom_call.1} parent=11 // pred_check
        %p151 = pneg %p32
      $region14: #{tpu_custom_call.1} parent=11 // pred_check_branch
        %153 = sbr.rel (%p151) target = $region16
      $region15: #{tpu_custom_call.1} parent=11 // pred_region
        _
      $region16: #{tpu_custom_call.1} parent=11 // pred_fallthru
        _
    $region12: #{tpu_custom_call.1} parent=5 // pred_fallthru
      _
    %p154 = scmp.lt.s32.totalorder %s11, 2
    // Predicated region
    $region17: #{tpu_custom_call.1} parent=5 // pred_check
      %p155 = pneg %p154
    $region18: #{tpu_custom_call.1} parent=5 // pred_check_branch
      %157 = sbr.rel (%p155) target = $region20
    $region19: #{tpu_custom_call.1} parent=5 // pred_region
      // Predicated region
      $region21: #{tpu_custom_call.1} parent=19 // pred_check
        %p158 = pneg %p52
      $region22: #{tpu_custom_call.1} parent=19 // pred_check_branch
        %160 = sbr.rel (%p158) target = $region24
      $region23: #{tpu_custom_call.1} parent=19 // pred_region
        %p161 = scmp.lt.s32.totalorder %s11, 1
        %s162 = scalar_select %p161, %s11, 1
        %s163 = smul.addr %s162, 4
        %s164 = smul.addr %s163, 4
        %s165 = scalar_lea.vmem %s1, %s164
      $region24: #{tpu_custom_call.1} parent=19 // pred_fallthru
        _
      // Predicated region
      $region25: #{tpu_custom_call.1} parent=19 // pred_check
        %p166 = pneg %p78
      $region26: #{tpu_custom_call.1} parent=19 // pred_check_branch
        %168 = sbr.rel (%p166) target = $region28
      $region27: #{tpu_custom_call.1} parent=19 // pred_region
        %p169 = scmp.lt.s32.totalorder %s11, 1
        %s170 = scalar_select %p169, %s11, 1
        %s171 = smul.addr %s170, 4
        %s172 = smul.addr %s171, 8
        %s173 = scalar_lea.vmem %s2, %s172
      $region28: #{tpu_custom_call.1} parent=19 // pred_fallthru
        _
      // Predicated region
      $region29: #{tpu_custom_call.1} parent=19 // pred_check
        %p174 = pneg %p104
      $region30: #{tpu_custom_call.1} parent=19 // pred_check_branch
        %176 = sbr.rel (%p174) target = $region32
      $region31: #{tpu_custom_call.1} parent=19 // pred_region
        %p177 = scmp.lt.s32.totalorder %s11, 1
        %s178 = scalar_select %p177, %s11, 1
        %s179 = smul.addr %s178, 4
        %s180 = smul.addr %s179, 8
        %s181 = scalar_lea.vmem %s3, %s180
      $region32: #{tpu_custom_call.1} parent=19 // pred_fallthru
        _
    $region20: #{tpu_custom_call.1} parent=5 // pred_fallthru
      _
    %p182 = scmp.le.s32.totalorder 1, %s11
    %p183 = scmp.lt.s32.totalorder %s11, 3
    %p184 = pnand %p182, %p183
    %p185 = pneg %p184
    // Predicated region
    $region33: #{tpu_custom_call.1} parent=5 // pred_check
      _
    $region34: #{tpu_custom_call.1} parent=5 // pred_check_branch
      %187 = sbr.rel (%p184) target = $region36
    $region35: #{tpu_custom_call.1} parent=5 // pred_region
      %s188 = ssub.s32 %s11, 1
      %p189 = pneg %p32
      %p190 = pneg %p29
      %p191 = scmp.lt.s32.totalorder %s16, 1
      %s192 = scalar_select %p191, %s16, 1
      %s193 = smul.addr %s192, 4
      %s194 = smul.addr %s193, 4
      %s195 = scalar_lea.vmem %s1, %s194
      %p196 = pneg %p58
      %p197 = pneg %p55
      %p198 = scmp.lt.s32.totalorder %s16, 1
      %s199 = scalar_select %p198, %s16, 1
      %s200 = smul.addr %s199, 4
      %s201 = smul.addr %s200, 8
      %s202 = scalar_lea.vmem %s2, %s201
      %p203 = pneg %p84
      %p204 = pneg %p81
      %p205 = scmp.lt.s32.totalorder %s16, 1
      %s206 = scalar_select %p205, %s16, 1
      %s207 = smul.addr %s206, 4
      %s208 = smul.addr %s207, 8
      %s209 = scalar_lea.vmem %s3, %s208
      %p210 = pneg %p110
      %p211 = pneg %p107
      %p212 = pneg %p136
      %p213 = pneg %p133
      %p214 = scmp.lt.s32.totalorder %s16, 1
      %s215 = scalar_select %p214, %s16, 1
      %s216 = smul.addr %s215, 4
      %s217 = smul.addr %s216, 4
      %s218 = scalar_lea.vmem %s4, %s217
      %p219 = scmp.lt.s32.totalorder %s16, 1
      %s220 = scalar_select %p219, %s16, 1
      %s221 = smul.addr %s220, 4
      %s222 = smul.addr %s221, 4
      %s223 = scalar_lea.vmem %s1, %s222
      %p224 = scmp.lt.s32.totalorder %s16, 1
      %s225 = scalar_select %p224, %s16, 1
      %s226 = smul.addr %s225, 4
      %s227 = smul.addr %s226, 8
      %s228 = scalar_lea.vmem %s2, %s227
      %p229 = scmp.lt.s32.totalorder %s16, 1
      %s230 = scalar_select %p229, %s16, 1
      %s231 = smul.addr %s230, 4
      %s232 = smul.addr %s231, 8
      %s233 = scalar_lea.vmem %s3, %s232
      %p234 = scmp.lt.s32.totalorder %s16, 1
      %s235 = scalar_select %p234, %s16, 1
      %s236 = smul.addr %s235, 4
      %s237 = smul.addr %s236, 4
      %s238 = scalar_lea.vmem %s4, %s237
      %s239 = sld [smem:[#allocation2]]
      %v240 = vld [vmem:[%s223] sm:$0x77]
      %v241 = vld [vmem:[%s223 + $0x8] sm:$0x77]
      %v242 = vld [vmem:[%s228] sm:$0x1f]
      %v243 = vld [vmem:[%s228 + $0x8] sm:$0x1f]
      %v244 = vld [vmem:[%s228 + $0x10] sm:$0x1f]
      %v245 = vld [vmem:[%s228 + $0x18] sm:$0x1f]
      %v246 = vld [vmem:[%s233] sm:$0x1f]
      %v247 = vld [vmem:[%s233 + $0x8] sm:$0x1f]
      %v248 = vld [vmem:[%s233 + $0x10] sm:$0x1f]
      %v249 = vld [vmem:[%s233 + $0x18] sm:$0x1f]
      %v250 = vstv %s239
      %v251 = vmul.f32 %v240, %v250
      %v252 = vmul.f32 %v241, %v250
      %v255 = vcombine.high %v251, %v251
      %v256 = vcombine.high %v252, %v252
      %259 = vmatprep.subr.mxu0 0.0
      %260 = vmatpush1.xpose.msra.mxu0 0.0
      %261 = vmatprep.subr.mxu0 0.0
      %262 = vmatpush1.xpose.msra.mxu0 0.0
      %263 = vmatprep.subr.mxu0 0.0
      %264 = vmatpush1.xpose.msra.mxu0 0.0
      %265 = vmatprep.subr.mxu0 0.0
      %266 = vmatpush1.xpose.msra.mxu0 0.0
      %267 = vmatprep.subr.mxu0 0.0
      %268 = vmatpush1.xpose.msra.mxu0 0.0
      %269 = vmatprep.subr.mxu0 0.0
      %270 = vmatpush1.xpose.msra.mxu0 0.0
      %271 = vmatprep.subr.mxu0 0.0
      %272 = vmatpush1.xpose.msra.mxu0 0.0
      %273 = vmatprep.subr.mxu0 0.0
      %274 = vmatpush1.xpose.msra.mxu0 0.0
      %275 = vmatprep.subr.mxu0 0.0
      %276 = vmatpush1.xpose.msra.mxu0 0.0
      %277 = vmatprep.subr.mxu0 0.0
      %278 = vmatpush1.xpose.msra.mxu0 0.0
      %279 = vmatprep.subr.mxu0 0.0
      %280 = vmatpush1.xpose.msra.mxu0 0.0
      %281 = vmatprep.subr.mxu0 0.0
      %282 = vmatpush1.xpose.msra.mxu0 0.0
      %283 = vmatprep.subr.mxu0 0.0
      %284 = vmatpush1.xpose.msra.mxu0 0.0
      %285 = vmatprep.subr.mxu0 0.0
      %286 = vmatpush1.xpose.msra.mxu0 0.0
      %287 = vmatprep.subr.mxu0 0.0
      %288 = vmatpush1.xpose.msra.mxu0 0.0
      %289 = vmatprep.subr.mxu0 %v243
      %290 = vmatpush1.xpose.msra.mxu0 %v242
      %291 = vmatprep.subr.mxu0 0.0
      %292 = vmatpush2.xpose.msra.mxu0 0.0
      %293 = vmatprep.subr.mxu0 0.0
      %294 = vmatpush2.xpose.msra.mxu0 0.0
      %295 = vmatprep.subr.mxu0 0.0
      %296 = vmatpush2.xpose.msra.mxu0 0.0
      %297 = vmatprep.subr.mxu0 0.0
      %298 = vmatpush2.xpose.msra.mxu0 0.0
      %299 = vmatprep.subr.mxu0 0.0
      %300 = vmatpush2.xpose.msra.mxu0 0.0
      %301 = vmatprep.subr.mxu0 0.0
      %302 = vmatpush2.xpose.msra.mxu0 0.0
      %303 = vmatprep.subr.mxu0 0.0
      %304 = vmatpush2.xpose.msra.mxu0 0.0
      %305 = vmatprep.subr.mxu0 0.0
      %306 = vmatpush2.xpose.msra.mxu0 0.0
      %307 = vmatprep.subr.mxu0 0.0
      %308 = vmatpush2.xpose.msra.mxu0 0.0
      %309 = vmatprep.subr.mxu0 0.0
      %310 = vmatpush2.xpose.msra.mxu0 0.0
      %311 = vmatprep.subr.mxu0 0.0
      %312 = vmatpush2.xpose.msra.mxu0 0.0
      %313 = vmatprep.subr.mxu0 0.0
      %314 = vmatpush2.xpose.msra.mxu0 0.0
      %315 = vmatprep.subr.mxu0 0.0
      %316 = vmatpush2.xpose.msra.mxu0 0.0
      %317 = vmatprep.subr.mxu0 0.0
      %318 = vmatpush2.xpose.msra.mxu0 0.0
      %319 = vmatprep.subr.mxu0 0.0
      %320 = vmatpush2.xpose.msra.mxu0 0.0
      %321 = vmatprep.subr.mxu0 0.0
      %322 = vmatpush2.xpose.msra.mxu0 0.0
      %323 = vmatprep.mubr.f32.mxu0 %v255
      %324 = vmatmul.mubr.f32.gmra.mxu0 %v251
      %v325 = vpop.f32.mrf.mxu0
      %v326 = vadd.f32 0.0, %v325
      %v327 = vpop.f32.mrf.mxu0
      %328 = vdwg.mxu0
      %329 = vmatprep.subr.mxu0 0.0
      %330 = vmatpush1.xpose.msra.mxu0 0.0
      %331 = vmatprep.subr.mxu0 0.0
      %332 = vmatpush1.xpose.msra.mxu0 0.0
      %333 = vmatprep.subr.mxu0 0.0
      %334 = vmatpush1.xpose.msra.mxu0 0.0
      %335 = vmatprep.subr.mxu0 0.0
      %336 = vmatpush1.xpose.msra.mxu0 0.0
      %337 = vmatprep.subr.mxu0 0.0
      %338 = vmatpush1.xpose.msra.mxu0 0.0
      %339 = vmatprep.subr.mxu0 0.0
      %340 = vmatpush1.xpose.msra.mxu0 0.0
      %341 = vmatprep.subr.mxu0 0.0
      %342 = vmatpush1.xpose.msra.mxu0 0.0
      %343 = vmatprep.subr.mxu0 0.0
      %344 = vmatpush1.xpose.msra.mxu0 0.0
      %345 = vmatprep.subr.mxu0 0.0
      %346 = vmatpush1.xpose.msra.mxu0 0.0
      %347 = vmatprep.subr.mxu0 0.0
      %348 = vmatpush1.xpose.msra.mxu0 0.0
      %349 = vmatprep.subr.mxu0 0.0
      %350 = vmatpush1.xpose.msra.mxu0 0.0
      %351 = vmatprep.subr.mxu0 0.0
      %352 = vmatpush1.xpose.msra.mxu0 0.0
      %353 = vmatprep.subr.mxu0 0.0
      %354 = vmatpush1.xpose.msra.mxu0 0.0
      %355 = vmatprep.subr.mxu0 0.0
      %356 = vmatpush1.xpose.msra.mxu0 0.0
      %357 = vmatprep.subr.mxu0 0.0
      %358 = vmatpush1.xpose.msra.mxu0 0.0
      %359 = vmatprep.subr.mxu0 %v245
      %360 = vmatpush1.xpose.msra.mxu0 %v244
      %361 = vmatprep.subr.mxu0 0.0
      %362 = vmatpush2.xpose.msra.mxu0 0.0
      %363 = vmatprep.subr.mxu0 0.0
      %364 = vmatpush2.xpose.msra.mxu0 0.0
      %365 = vmatprep.subr.mxu0 0.0
      %366 = vmatpush2.xpose.msra.mxu0 0.0
      %367 = vmatprep.subr.mxu0 0.0
      %368 = vmatpush2.xpose.msra.mxu0 0.0
      %369 = vmatprep.subr.mxu0 0.0
      %370 = vmatpush2.xpose.msra.mxu0 0.0
      %371 = vmatprep.subr.mxu0 0.0
      %372 = vmatpush2.xpose.msra.mxu0 0.0
      %373 = vmatprep.subr.mxu0 0.0
      %374 = vmatpush2.xpose.msra.mxu0 0.0
      %375 = vmatprep.subr.mxu0 0.0
      %376 = vmatpush2.xpose.msra.mxu0 0.0
      %377 = vmatprep.subr.mxu0 0.0
      %378 = vmatpush2.xpose.msra.mxu0 0.0
      %379 = vmatprep.subr.mxu0 0.0
      %380 = vmatpush2.xpose.msra.mxu0 0.0
      %381 = vmatprep.subr.mxu0 0.0
      %382 = vmatpush2.xpose.msra.mxu0 0.0
      %383 = vmatprep.subr.mxu0 0.0
      %384 = vmatpush2.xpose.msra.mxu0 0.0
      %385 = vmatprep.subr.mxu0 0.0
      %386 = vmatpush2.xpose.msra.mxu0 0.0
      %387 = vmatprep.subr.mxu0 0.0
      %388 = vmatpush2.xpose.msra.mxu0 0.0
      %389 = vmatprep.subr.mxu0 0.0
      %390 = vmatpush2.xpose.msra.mxu0 0.0
      %391 = vmatprep.subr.mxu0 0.0
      %392 = vmatpush2.xpose.msra.mxu0 0.0
      %393 = vmatprep.mubr.f32.mxu0 %v256
      %394 = vmatmul.mubr.f32.gmra.mxu0 %v252
      %v395 = vpop.f32.mrf.mxu0
      %v396 = vadd.f32 %v326, %v395
      %v397 = vpop.f32.mrf.mxu0
      %398 = vdwg.mxu0
      %vm399 = vcmask 34816
      %v400 = vsel %vm399, %v396, -inf
      %401 = vmax.xlane.f32.xlu0 %v400
      %v402 = vpop.xlane.xlu0 %401
      %v403 = vsub.f32 %v396, %v402
      %v404 = vmul.f32 %v403, 1.442695
      %v405 = vpow.pop %v404
      %v406 = vsel %vm399, %v405, 0.0
      %407 = vadd.xlane.f32.xlu0 %v406
      %v408 = vpop.xlane.xlu0 %407
      %v409 = vrcp.pop %v408
      %v410 = vmul.f32 %v405, %v409
      %vm411 = vcmask 39936
      %v413 = vsel %vm411, %v410, 0
      %vm415 = vcmask 1044480
      %v417 = vsel %vm415, %v246, 0
      %v420 = vsel %vm415, %v247, 0
      %v423 = vsel %vm415, %v248, 0
      %v426 = vsel %vm415, %v249, 0
      %428 = vmatprep.subr.mxu0 0.0
      %429 = vmatpush1.msra.mxu0 0.0
      %430 = vmatprep.subr.mxu0 0.0
      %431 = vmatpush1.msra.mxu0 0.0
      %432 = vmatprep.subr.mxu0 0.0
      %433 = vmatpush1.msra.mxu0 0.0
      %434 = vmatprep.subr.mxu0 0.0
      %435 = vmatpush1.msra.mxu0 0.0
      %436 = vmatprep.subr.mxu0 0.0
      %437 = vmatpush1.msra.mxu0 0.0
      %438 = vmatprep.subr.mxu0 0.0
      %439 = vmatpush1.msra.mxu0 0.0
      %440 = vmatprep.subr.mxu0 0.0
      %441 = vmatpush1.msra.mxu0 0.0
      %442 = vmatprep.subr.mxu0 0.0
      %443 = vmatpush1.msra.mxu0 0.0
      %444 = vmatprep.subr.mxu0 0.0
      %445 = vmatpush1.msra.mxu0 0.0
      %446 = vmatprep.subr.mxu0 0.0
      %447 = vmatpush1.msra.mxu0 0.0
      %448 = vmatprep.subr.mxu0 0.0
      %449 = vmatpush1.msra.mxu0 0.0
      %450 = vmatprep.subr.mxu0 0.0
      %451 = vmatpush1.msra.mxu0 0.0
      %452 = vmatprep.subr.mxu0 0.0
      %453 = vmatpush1.msra.mxu0 0.0
      %454 = vmatprep.subr.mxu0 0.0
      %455 = vmatpush1.msra.mxu0 0.0
      %456 = vmatprep.subr.mxu0 0.0
      %457 = vmatpush1.msra.mxu0 0.0
      %458 = vmatprep.subr.mxu0 %v420
      %459 = vmatpush1.msra.mxu0 %v417
      %460 = vmatprep.subr.mxu0 0.0
      %461 = vmatpush2.msra.mxu0 0.0
      %462 = vmatprep.subr.mxu0 0.0
      %463 = vmatpush2.msra.mxu0 0.0
      %464 = vmatprep.subr.mxu0 0.0
      %465 = vmatpush2.msra.mxu0 0.0
      %466 = vmatprep.subr.mxu0 0.0
      %467 = vmatpush2.msra.mxu0 0.0
      %468 = vmatprep.subr.mxu0 0.0
      %469 = vmatpush2.msra.mxu0 0.0
      %470 = vmatprep.subr.mxu0 0.0
      %471 = vmatpush2.msra.mxu0 0.0
      %472 = vmatprep.subr.mxu0 0.0
      %473 = vmatpush2.msra.mxu0 0.0
      %474 = vmatprep.subr.mxu0 0.0
      %475 = vmatpush2.msra.mxu0 0.0
      %476 = vmatprep.subr.mxu0 0.0
      %477 = vmatpush2.msra.mxu0 0.0
      %478 = vmatprep.subr.mxu0 0.0
      %479 = vmatpush2.msra.mxu0 0.0
      %480 = vmatprep.subr.mxu0 0.0
      %481 = vmatpush2.msra.mxu0 0.0
      %482 = vmatprep.subr.mxu0 0.0
      %483 = vmatpush2.msra.mxu0 0.0
      %484 = vmatprep.subr.mxu0 0.0
      %485 = vmatpush2.msra.mxu0 0.0
      %486 = vmatprep.subr.mxu0 0.0
      %487 = vmatpush2.msra.mxu0 0.0
      %488 = vmatprep.subr.mxu0 0.0
      %489 = vmatpush2.msra.mxu0 0.0
      %490 = vmatprep.subr.mxu0 0.0
      %491 = vmatpush2.msra.mxu0 0.0
      %492 = vmatprep.mubr.f32.mxu0 0.0
      %493 = vmatmul.mubr.f32.gmra.mxu0 %v413
      %v494 = vpop.f32.mrf.mxu0
      %v495 = vadd.f32 0.0, %v494
      %v496 = vpop.f32.mrf.mxu0
      %v497 = vadd.f32 0.0, %v496
      %498 = vdwg.mxu0
      %499 = vmatprep.subr.mxu0 0.0
      %500 = vmatpush1.msra.mxu0 0.0
      %501 = vmatprep.subr.mxu0 0.0
      %502 = vmatpush1.msra.mxu0 0.0
      %503 = vmatprep.subr.mxu0 0.0
      %504 = vmatpush1.msra.mxu0 0.0
      %505 = vmatprep.subr.mxu0 0.0
      %506 = vmatpush1.msra.mxu0 0.0
      %507 = vmatprep.subr.mxu0 0.0
      %508 = vmatpush1.msra.mxu0 0.0
      %509 = vmatprep.subr.mxu0 0.0
      %510 = vmatpush1.msra.mxu0 0.0
      %511 = vmatprep.subr.mxu0 0.0
      %512 = vmatpush1.msra.mxu0 0.0
      %513 = vmatprep.subr.mxu0 0.0
      %514 = vmatpush1.msra.mxu0 0.0
      %515 = vmatprep.subr.mxu0 0.0
      %516 = vmatpush1.msra.mxu0 0.0
      %517 = vmatprep.subr.mxu0 0.0
      %518 = vmatpush1.msra.mxu0 0.0
      %519 = vmatprep.subr.mxu0 0.0
      %520 = vmatpush1.msra.mxu0 0.0
      %521 = vmatprep.subr.mxu0 0.0
      %522 = vmatpush1.msra.mxu0 0.0
      %523 = vmatprep.subr.mxu0 0.0
      %524 = vmatpush1.msra.mxu0 0.0
      %525 = vmatprep.subr.mxu0 0.0
      %526 = vmatpush1.msra.mxu0 0.0
      %527 = vmatprep.subr.mxu0 0.0
      %528 = vmatpush1.msra.mxu0 0.0
      %529 = vmatprep.subr.mxu0 %v426
      %530 = vmatpush1.msra.mxu0 %v423
      %531 = vmatprep.subr.mxu0 0.0
      %532 = vmatpush2.msra.mxu0 0.0
      %533 = vmatprep.subr.mxu0 0.0
      %534 = vmatpush2.msra.mxu0 0.0
      %535 = vmatprep.subr.mxu0 0.0
      %536 = vmatpush2.msra.mxu0 0.0
      %537 = vmatprep.subr.mxu0 0.0
      %538 = vmatpush2.msra.mxu0 0.0
      %539 = vmatprep.subr.mxu0 0.0
      %540 = vmatpush2.msra.mxu0 0.0
      %541 = vmatprep.subr.mxu0 0.0
      %542 = vmatpush2.msra.mxu0 0.0
      %543 = vmatprep.subr.mxu0 0.0
      %544 = vmatpush2.msra.mxu0 0.0
      %545 = vmatprep.subr.mxu0 0.0
      %546 = vmatpush2.msra.mxu0 0.0
      %547 = vmatprep.subr.mxu0 0.0
      %548 = vmatpush2.msra.mxu0 0.0
      %549 = vmatprep.subr.mxu0 0.0
      %550 = vmatpush2.msra.mxu0 0.0
      %551 = vmatprep.subr.mxu0 0.0
      %552 = vmatpush2.msra.mxu0 0.0
      %553 = vmatprep.subr.mxu0 0.0
      %554 = vmatpush2.msra.mxu0 0.0
      %555 = vmatprep.subr.mxu0 0.0
      %556 = vmatpush2.msra.mxu0 0.0
      %557 = vmatprep.subr.mxu0 0.0
      %558 = vmatpush2.msra.mxu0 0.0
      %559 = vmatprep.subr.mxu0 0.0
      %560 = vmatpush2.msra.mxu0 0.0
      %561 = vmatprep.subr.mxu0 0.0
      %562 = vmatpush2.msra.mxu0 0.0
      %563 = vmatprep.mubr.f32.mxu0 0.0
      %564 = vmatmul.mubr.f32.gmra.mxu0 %v413
      %v565 = vpop.f32.mrf.mxu0
      %v566 = vadd.f32 0.0, %v565
      %v567 = vpop.f32.mrf.mxu0
      %v568 = vadd.f32 0.0, %v567
      %569 = vdwg.mxu0
      %v574 = vcombine.low %v495, %v497
      %v575 = vcombine.low %v566, %v568
      %578 = vst [vmem:[%s238] sm:$0x77] %v574
      %579 = vst [vmem:[%s238 + $0x8] sm:$0x77] %v575
      %p580 = scmp.lt.s32.totalorder %s16, 1
      %s581 = scalar_select %p580, %s16, 1
      %s582 = smul.addr %s581, 4
      %s583 = smul.addr %s582, 4
      %s584 = scalar_lea.vmem %s4, %s583
      // Predicated region
      $region37: #{tpu_custom_call.1} parent=35 // pred_check
        %p585 = pneg %p133
      $region38: #{tpu_custom_call.1} parent=35 // pred_check_branch
        %587 = sbr.rel (%p585) target = $region40
      $region39: #{tpu_custom_call.1} parent=35 // pred_region
        _
      $region40: #{tpu_custom_call.1} parent=35 // pred_fallthru
        _
    $region36: #{tpu_custom_call.1} parent=5 // pred_fallthru
      _
    %p588 = scmp.le.s32.totalorder 2, %s11
    // Predicated region
    $region41: #{tpu_custom_call.1} parent=5 // pred_check
      %p589 = pneg %p588
    $region42: #{tpu_custom_call.1} parent=5 // pred_check_branch
      %591 = sbr.rel (%p589) target = $region44
    $region43: #{tpu_custom_call.1} parent=5 // pred_region
      %s592 = ssub.s32 %s11, 2
      // Predicated region
      $region45: #{tpu_custom_call.1} parent=43 // pred_check
        %p593 = pneg %p139
      $region46: #{tpu_custom_call.1} parent=43 // pred_check_branch
        %595 = sbr.rel (%p593) target = $region48
      $region47: #{tpu_custom_call.1} parent=43 // pred_region
        %p596 = scmp.lt.s32.totalorder %s17, 1
        %s597 = scalar_select %p596, %s17, 1
        %s598 = smul.addr %s597, 4
        %s599 = smul.addr %s598, 4
        %s600 = scalar_lea.vmem %s4, %s599
      $region48: #{tpu_custom_call.1} parent=43 // pred_fallthru
        _
    $region44: #{tpu_custom_call.1} parent=5 // pred_fallthru
      _
  $region6: #{tpu_custom_call.1} parent=0 // loop_footer
    %s15 = sadd.s32 1, %s11
  $region7: #{tpu_custom_call.1} parent=0 // loop_footer_branch
    %10 = sbr.rel target = $region3
  $region8: #{tpu_custom_call.1} parent=0 // loop_exit
    _

</llo_original>
